<compile_context>
chip_gen: v7x
topology: tpu7x:2x2x1
jax: 0.10.0
libtpu: 0.0.40
codegen_flags: <defaults>
</compile_context>

<pallas_src>
import functools
import numpy as np

import jax
import jax.numpy as jnp
from jax import lax
from jax.experimental import pallas as pl
from jax.experimental.pallas import tpu as pltpu


# ---------------------------------------------------------------------------
# Counter-based per-element uniform (murmur3 fmix32 on int32, logical shifts).
# ---------------------------------------------------------------------------
def _i32(x):
    """Python int -> two's-complement int32 value (avoids numpy overflow errors)."""
    x &= 0xFFFFFFFF
    return x - (1 << 32) if x >= (1 << 31) else x


_GOLDEN = _i32(0x9E3779B9)
_FMIX_C1 = _i32(0x85EBCA6B)
_FMIX_C2 = _i32(0xC2B2AE35)
_MASK24 = (1 << 24) - 1
_INV24 = 1.0 / (1 << 24)


def _shr(x, k):
    """Logical right shift for int32: arithmetic shift then mask off sign bits."""
    return (x >> k) & jnp.int32((1 << (32 - k)) - 1)


def _hash_to_uniform(idx, seed):
    """fmix32(idx ^ seed*golden) -> U[0,1) float32 with 24-bit resolution."""
    x = idx ^ (seed * jnp.int32(_GOLDEN))
    x = x ^ _shr(x, 16)
    x = x * jnp.int32(_FMIX_C1)
    x = x ^ _shr(x, 13)
    x = x * jnp.int32(_FMIX_C2)
    x = x ^ _shr(x, 16)
    return (x & jnp.int32(_MASK24)).astype(jnp.float32) * jnp.float32(_INV24)


# ---------------------------------------------------------------------------
# Kernels
# ---------------------------------------------------------------------------
def _sb_train_kernel(seed_ref, x_ref, o_ref, *, row_len):
    tr, tc = x_ref.shape
    i = pl.program_id(0)
    j = pl.program_id(1)
    # Global element index -> hash is independent of the tiling / grid order.
    rows = lax.broadcasted_iota(jnp.int32, (tr, tc), 0) + i * tr
    cols = lax.broadcasted_iota(jnp.int32, (tr, tc), 1) + j * tc
    flat_idx = rows * jnp.int32(_i32(row_len)) + cols
    u = _hash_to_uniform(flat_idx, seed_ref[0])
    x = x_ref[...].astype(jnp.float32)
    # sigmoid(x) > u  <=>  (1 - u) > u * exp(-x)    (no divide; exp goes to EUP)
    keep = (1.0 - u) > u * jnp.exp(-x)
    o_ref[...] = keep.astype(o_ref.dtype)


def _sb_eval_kernel(x_ref, o_ref):
    # sigmoid(x) > 0.5  <=>  x > 0  (monotone) -- no exp, no divide.
    o_ref[...] = (x_ref[...] > 0).astype(o_ref.dtype)


# ---------------------------------------------------------------------------
# Tiling / layout helpers
# ---------------------------------------------------------------------------
_LANE_CAP = 1024          # preferred lane width for the lane-dense flattened view
_BLOCK_BYTES = 4 << 20    # ~4 MiB input per block (amortizes ~0.35us/step overhead)
_VMEM_BUDGET = 24 << 20   # 2-in + 2-out double-buffered blocks; safe on v7x (64 MiB)


def _lane_dense_view(shape):
    """Copy-free 2-D (rows, C) view with C a multiple of 128 when possible."""
    n = int(np.prod(shape)) if len(shape) else 1
    for k in range(_LANE_CAP // 128, 0, -1):
        c = 128 * k
        if n % c == 0:
            return n // c, c
    # Fallback: keep the model's trailing dim (masked partial stores if <128).
    d = shape[-1] if len(shape) >= 1 else 1
    return max(n // max(d, 1), 1), max(d, 1)


def _choose_tiles(M, C, in_itemsize, out_itemsize):
    """Byte-targeted block shape; lane axis is tiled too when C is huge."""
    per_elem = 2 * (in_itemsize + out_itemsize)            # double-buffered in+out
    max_elems = max(1024, min(_BLOCK_BYTES // in_itemsize, _VMEM_BUDGET // per_elem))
    # Lane tile: full C when 8 rows fit; otherwise a multiple of 128.
    # NOTE: when C is not a multiple of 128 the block must span the full dim.
    if C <= 128 or 8 * C <= max_elems or C % 128 != 0:
        tc = C
    else:
        tc = max(128, ((max_elems // 8) // 128) * 128)
        tc = min(tc, C)
    tr = max(1, max_elems // tc)
    if tr >= M:
        tr = M
    else:
        tr = max(8, (tr // 8) * 8)
        if tr > M:
            tr = M
    # Megacore: prefer >= 2 blocks on the parallel row axis when possible.
    if tr == M and M >= 16:
        half = (M + 1) // 2
        tr = min(M, ((half + 7) // 8) * 8)
    return tr, tc


def _vmem_limit_bytes():
    """Generation-aware scoped-VMEM limit (32 MiB on v7x, up to 64 MiB elsewhere)."""
    try:
        cap = pltpu.get_tpu_info().vmem_capacity_bytes
    except Exception:
        return 32 << 20
    return int(min(max(cap // 2, 32 << 20), 64 << 20))


# ---------------------------------------------------------------------------
# Wrapper
# ---------------------------------------------------------------------------
def _pallas_binarize(x2d, *, training, seed, out_dtype):
    M, C = x2d.shape
    in_item = np.dtype(x2d.dtype).itemsize
    out_item = np.dtype(out_dtype).itemsize
    tr, tc = _choose_tiles(M, C, in_item, out_item)
    grid = (pl.cdiv(M, tr), pl.cdiv(C, tc))

    # index_map absorbs the (optional) scalar-prefetch ref positionally.
    block = pl.BlockSpec((tr, tc), lambda i, j, *prefetch: (i, j))
    out_shape = jax.ShapeDtypeStruct((M, C), out_dtype)
    cparams = pltpu.CompilerParams(
        dimension_semantics=("parallel", "parallel"),
        vmem_limit_bytes=_vmem_limit_bytes(),
    )

    if training:
        seed_arr = jnp.asarray([seed], dtype=jnp.int32)
        return pl.pallas_call(
            functools.partial(_sb_train_kernel, row_len=C),
            out_shape=out_shape,
            grid_spec=pltpu.PrefetchScalarGridSpec(
                num_scalar_prefetch=1,
                grid=grid,
                in_specs=[block],
                out_specs=block,
            ),
            compiler_params=cparams,
        )(seed_arr, x2d)

    return pl.pallas_call(
        _sb_eval_kernel,
        out_shape=out_shape,
        grid_spec=pltpu.PrefetchScalarGridSpec(
            num_scalar_prefetch=0,
            grid=grid,
            in_specs=[block],
            out_specs=block,
        ),
        compiler_params=cparams,
    )(x2d)


def stochastic_binarization(logits, *, training=True, seed=0, out_dtype=jnp.float32):
    """Forward pass of StochasticBinarizationLayer.

    training=True : h ~ U[0,1) per element (counter-based hash keyed by `seed`).
    training=False: h = 0.5.
    Returns (sigmoid(logits) > h) cast to `out_dtype` (default float32 to match
    torch `.float()`; bf16/int8 are valid and cut HBM write traffic).
    """
    orig_shape = logits.shape
    M, C = _lane_dense_view(orig_shape)
    x2d = logits.reshape(M, C)
    out2d = _pallas_binarize(x2d, training=training, seed=seed, out_dtype=out_dtype)
    return out2d.reshape(orig_shape)


# ---------------------------------------------------------------------------
# Self-test
# ---------------------------------------------------------------------------
if __name__ == "__main__":
    key = jax.random.PRNGKey(0)
    B, S, D = 2, 8, 128
    logits = jax.random.normal(key, (B, S, D), dtype=jnp.float32)

    # --- eval mode (h = 0.5): deterministic, must match the pure-JAX reference.
    # Keep |logits| away from 0 so float rounding at the threshold cannot flip bits.
    safe = jnp.where(jnp.abs(logits) < 0.05, jnp.float32(0.05), logits)
    out_eval = jax.block_until_ready(stochastic_binarization(safe, training=False))
    ref_eval = (jax.nn.sigmoid(safe) > 0.5).astype(jnp.float32)
    assert out_eval.shape == (B, S, D) and out_eval.dtype == jnp.float32
    assert jnp.array_equal(out_eval, ref_eval)

    # --- training mode (h ~ U[0,1)): extreme logits binarize (almost surely)
    # deterministically since sigmoid ~= 1 or ~= 0.
    extreme = jnp.concatenate(
        [jnp.full((1, S, D), 20.0, jnp.float32),
         jnp.full((1, S, D), -20.0, jnp.float32)], axis=0)
    out_tr = jax.block_until_ready(
        stochastic_binarization(extreme, training=True, seed=123))
    assert jnp.array_equal(out_tr[0], jnp.ones((S, D), jnp.float32))
    assert float(jnp.mean(out_tr[1])) <= 0.01   # only u == 0 exactly can fire

    # --- training mode on generic logits: output must be exactly binary.
    out_rand = jax.block_until_ready(
        stochastic_binarization(logits, training=True, seed=7))
    assert out_rand.shape == (B, S, D) and out_rand.dtype == jnp.float32
    assert bool(jnp.all((out_rand == 0.0) | (out_rand == 1.0)))

    print("KERNEL_OK")
</pallas_src>

<mosaic_0001>
module attributes {stable_mosaic.version = 11 : i64} {
  func.func @_sb_eval_kernel(%arg0: i32, %arg1: i32, %arg2: memref<2x1024xf32, #tpu.memory_space<vmem>>, %arg3: memref<2x1024xf32, #tpu.memory_space<vmem>>) attributes {dimension_semantics = [#tpu.dimension_semantics<parallel>, #tpu.dimension_semantics<parallel>], iteration_bounds = array<i64: 1, 1>, scalar_prefetch = 0 : i64, scratch_operands = 0 : i64, tpu.core_type = #tpu.core_type<tc>, window_params = [{transform_indices = @transform_0, window_bounds = array<i64: 2, 1024>}, {transform_indices = @transform_1, window_bounds = array<i64: 2, 1024>}]} {
    %c0 = arith.constant 0 : index
    %c0_0 = arith.constant 0 : index
    %0 = vector.load %arg2[%c0, %c0_0] : memref<2x1024xf32, #tpu.memory_space<vmem>>, vector<2x1024xf32>
    %cst = arith.constant 0.000000e+00 : f32
    %1 = vector.broadcast %cst : f32 to vector<2x1024xf32>
    %2 = arith.cmpf ogt, %0, %1 : vector<2x1024xf32>
    %3 = arith.extui %2 : vector<2x1024xi1> to vector<2x1024xi32>
    %4 = arith.sitofp %3 : vector<2x1024xi32> to vector<2x1024xf32>
    %c0_1 = arith.constant 0 : index
    %c0_2 = arith.constant 0 : index
    %5 = vector.load %arg3[%c0_1, %c0_2] : memref<2x1024xf32, #tpu.memory_space<vmem>>, vector<2x1024xf32>
    tpu.vector_store %arg3[%c0_1, %c0_2], %4 {strides = array<i32>} : memref<2x1024xf32, #tpu.memory_space<vmem>>, vector<2x1024xf32>,
    return
  }
  func.func @transform_0(%arg0: i32, %arg1: i32) -> (i32, i32) {
    %c0_i32 = arith.constant 0 : i32
    return %arg0, %arg1 : i32, i32
  }
  func.func @transform_1(%arg0: i32, %arg1: i32) -> (i32, i32) {
    %c0_i32 = arith.constant 0 : i32
    return %arg0, %arg1 : i32, i32
  }
}

</mosaic_0001>

<llo_original>
// kernel: tpu_custom_call.1
$region0: #{tpu_custom_call.1}
  #allocation0 [shape = 'u32[]', space=smem, size = 0x4, offset = 0x4, fixed_abs, tag = 'smem constant byte address 0x4 - core index']
  #allocation1 [shape = 'u32[144,128]{1,0:T(1,128)}', space=vmem, size = 0x12000, scoped, tag = 'internal scratch']
  %s0 = inlined_call_operand.hbm [shape: f32[2,1024], index: 0, kind: input, shape index: {}]
  %s1 = inlined_call_operand.hbm [shape: f32[2,1024], index: 1, kind: output, shape index: {}]
  %s2 = sld [smem:[#allocation0]]
  $region18: #{tpu_custom_call.1} parent=0
    _
  %s4 = ssub.s32 1, %s2
  %s5 = scalar_select 0, %s4, %s2
  $region1: #{tpu_custom_call.1} parent=0
    #allocation2 [shape = 'u8[8192]{0}', space=vmem, size = 0x2000, scoped, tag = 'input window, operand 0, single buffered']
    #allocation3 [shape = 's32[1]{0}', space=sflag, size = 0x4, scoped, tag = 'scoped memory for tpu_custom_call.1']
    #allocation4 [shape = 's32[1]{0}', space=sflag, size = 0x4, scoped, tag = 'scoped memory for tpu_custom_call.1']
    #allocation5 [shape = 'u8[8192]{0}', space=vmem, size = 0x2000, scoped, tag = 'output window, operand 0, single buffered']
    %6 = vsyncpa [#allocation3], 0
    %7 = vsyncpa [#allocation4], 0
    // Predicated region
    $region2: #{tpu_custom_call.1} parent=1 // pred_check
      _
    $region3: #{tpu_custom_call.1} parent=1 // pred_check_branch
      %9 = sbr.rel (0) target = $region5
    $region4: #{tpu_custom_call.1} parent=1 // pred_region
      %s11 = ssub.s32 256, 256
      %12 = vsyncadd [#allocation3], %s11
      %s14 = sshll.u32 [#allocation2], 4
      %s15 = int_to_ptr.vmem [resolvable:$true] %s14
      %17 = dma.hbm_to_vmem [thread:$0]  %s0, 256, %s15, [#allocation3]
    $region5: #{tpu_custom_call.1} parent=1 // pred_fallthru
      _
    // Predicated region
    $region6: #{tpu_custom_call.1} parent=1 // pred_check
      _
    $region7: #{tpu_custom_call.1} parent=1 // pred_check_branch
      %19 = sbr.rel (0) target = $region9
    $region8: #{tpu_custom_call.1} parent=1 // pred_region
      %20 = dma.done [#allocation3], 256
    $region9: #{tpu_custom_call.1} parent=1 // pred_fallthru
      _
    %v21 = vld [vmem:[#allocation2] sm:$0xff]
    %v22 = vld [vmem:[#allocation2 + $0x8] sm:$0xff]
    %vm23 = vcmp.gt.f32.partialorder %v21, 0.0
    %vm24 = vcmp.gt.f32.partialorder %v22, 0.0
    %v25 = vsel %vm23, 1, 0
    %v26 = vsel %vm24, 1, 0
    %v27 = vcvt.s32.f32 %v25
    %v28 = vcvt.s32.f32 %v26
    %29 = vst [vmem:[#allocation5] sm:$0xff] %v27
    %30 = vst [vmem:[#allocation5 + $0x8] sm:$0xff] %v28
    // Predicated region
    $region10: #{tpu_custom_call.1} parent=1 // pred_check
      _
    $region11: #{tpu_custom_call.1} parent=1 // pred_check_branch
      %32 = sbr.rel (0) target = $region13
    $region12: #{tpu_custom_call.1} parent=1 // pred_region
      %s34 = ssub.s32 256, 256
      %35 = vsyncadd [#allocation4], %s34
      %s37 = sshll.u32 [#allocation5], 4
      %s38 = int_to_ptr.vmem [resolvable:$true] %s37
      %40 = dma.vmem_to_hbm [thread:$0]  %s38, 256, %s1, [#allocation4]
    $region13: #{tpu_custom_call.1} parent=1 // pred_fallthru
      _
    // Predicated region
    $region14: #{tpu_custom_call.1} parent=1 // pred_check
      _
    $region15: #{tpu_custom_call.1} parent=1 // pred_check_branch
      %42 = sbr.rel (0) target = $region17
    $region16: #{tpu_custom_call.1} parent=1 // pred_region
      %43 = dma.done [#allocation4], 256
    $region17: #{tpu_custom_call.1} parent=1 // pred_fallthru
      _
    %44 = vsyncpa [#allocation3], 1
    %45 = vsyncpa [#allocation4], 1

</llo_original>
